<compile_context>
chip_gen: v7x
topology: tpu7x:2x2x1
jax: 0.10.0
libtpu: 0.0.40
codegen_flags: <defaults>
</compile_context>

<pallas_src>
import functools

import jax
import jax.numpy as jnp
from jax import lax
from jax.experimental import pallas as pl
from jax.experimental.pallas import tpu as pltpu

_H1 = 64       # representation hidden width
_H2 = 128      # latent width
_LANE = 128    # TPU lane width

# Rows inside the packed (8, 256) bias/row tensor.
_ROW_B1, _ROW_B2, _ROW_BD1, _ROW_WD1A, _ROW_BH, _ROW_B256 = 0, 1, 2, 3, 4, 5


def _round_up(x, m):
    return (x + m - 1) // m * m


def _vmem_capacity_bytes():
    """Best-effort physical VMEM query; conservative fallback if unavailable."""
    try:
        info_fn = getattr(pltpu, "get_tpu_info", None)
        if info_fn is not None:
            cap = getattr(info_fn(), "vmem_capacity_bytes", None)
            if cap:
                return int(cap)
    except Exception:
        pass
    return 64 << 20   # safe on every generation (v7x physical minimum)


# ------------------------------- the kernel --------------------------------

@functools.lru_cache(maxsize=None)
def _build_kernel(apply_repr, has_action, action_col, action_size, cdt_name):
    """Kernel specialized on the (static) forward variant.

    action_col is None when the action arrives as a separate (TB,1) input,
    otherwise it is the lane of x holding the stashed action scalar.
    """
    cdt = jnp.dtype(cdt_name)
    action_in_x = action_col is not None

    def kernel(*refs):
        it = iter(refs)
        x_ref = next(it)                                        # (TB, S_pad) or (TB, 128) f32
        a_ref = next(it) if (has_action and not action_in_x) else None   # (TB, 1) f32
        w1_ref = next(it) if apply_repr else None               # (S_pad, 128)
        sq_ref = next(it) if (apply_repr or has_action) else None        # (2,128,128) [w2, wd1h]
        tail_ref = next(it) if has_action else None             # (128, 256) [wd2@Wh | wd2]
        headw_ref = None if has_action else next(it)            # (128, 128)
        rows_ref = next(it)                                     # (8, 256) f32
        out_ref = next(it)                                      # (TB, 256) f32 out

        rows = rows_ref[...]                                    # hoist biases once
        b1 = rows[_ROW_B1:_ROW_B1 + 1, :_H2]
        b2 = rows[_ROW_B2:_ROW_B2 + 1, :_H2]
        bd1 = rows[_ROW_BD1:_ROW_BD1 + 1, :_H2]
        wd1a = rows[_ROW_WD1A:_ROW_WD1A + 1, :_H2]
        bh = rows[_ROW_BH:_ROW_BH + 1, :_H2]
        b256 = rows[_ROW_B256:_ROW_B256 + 1, :]

        if apply_repr:
            # representation: Linear(S,64) -> ReLU -> Linear(64,128)
            # (zero-padded to 128 lanes; padding is mathematically exact)
            x = x_ref[...]
            h = jnp.dot(x.astype(cdt), w1_ref[...],
                        preferred_element_type=jnp.float32)
            h = jnp.maximum(h + b1, 0.0)
            h = jnp.dot(h.astype(cdt), sq_ref[0],
                        preferred_element_type=jnp.float32) + b2
        else:
            h = x_ref[...].astype(jnp.float32)

        if has_action:
            # dynamics_state on cat([h, a]): h @ Wd1h + a * wd1a_row + bd1
            if action_in_x:
                a = x_ref[:, action_col:action_col + 1]          # lives in a zero lane of x
            else:
                a = a_ref[...]
            a = a.astype(jnp.float32)
            d = jnp.dot(h.astype(cdt), sq_ref[1],
                        preferred_element_type=jnp.float32)
            d = jnp.maximum(d + a * wd1a + bd1, 0.0)
            # Fused tail: one (TB,128)@(128,256) matmul -> [head_preact | hidden]
            slab = jnp.dot(d.astype(cdt), tail_ref[...],
                           preferred_element_type=jnp.float32) + b256
            head = slab[:, :_H2]
            hidden = slab[:, _H2:]
        else:
            head = jnp.dot(h.astype(cdt), headw_ref[...],
                           preferred_element_type=jnp.float32) + bh
            hidden = h

        # Fused head activations:
        #   lanes [0, A)   : policy logits  -> softmax (exact normalization)
        #   lane  A        : value logit    -> tanh
        #   lane  A+1      : reward pre-act -> relu
        #   lanes >= A+2   : zero padding
        lane = lax.broadcasted_iota(jnp.int32, head.shape, 1)
        is_policy = lane < action_size
        logits = jnp.where(is_policy, head, -jnp.inf)
        m = jnp.max(logits, axis=-1, keepdims=True)
        e = jnp.exp(logits - m)
        denom = jnp.sum(e, axis=-1, keepdims=True)
        p = e / denom
        out_head = jnp.where(is_policy, p,
                   jnp.where(lane == action_size, jnp.tanh(head),
                   jnp.where(lane == action_size + 1,
                             jnp.maximum(head, 0.0), 0.0)))

        out_ref[:, 0:_H2] = out_head                 # lane-aligned 128-wide stores
        out_ref[:, _H2:2 * _H2] = hidden

    return kernel


# ------------------------------ parameter prep ------------------------------

def init_muzero_params(key, state_size, action_size):
    """PyTorch-style uniform(-1/sqrt(fan_in)) init; weights pre-transposed to (in, out)."""
    def lin(k, fan_in, fan_out):
        kw, kb = jax.random.split(k)
        bound = 1.0 / jnp.sqrt(jnp.float32(fan_in))
        w = jax.random.uniform(kw, (fan_in, fan_out), jnp.float32, -bound, bound)
        b = jax.random.uniform(kb, (1, fan_out), jnp.float32, -bound, bound)
        return w, b

    ks = jax.random.split(key, 7)
    w1, b1 = lin(ks[0], state_size, _H1)            # representation[0]
    w2, b2 = lin(ks[1], _H1, _H2)                   # representation[2]
    wd1, bd1 = lin(ks[2], _H2 + 1, _H2)             # dynamics_state[0] (129->128)
    wd2, bd2 = lin(ks[3], _H2, _H2)                 # dynamics_state[2]
    wr, br = lin(ks[4], _H2, 1)                     # dynamics_reward[0]
    wp, bp = lin(ks[5], _H2, action_size)           # prediction_policy[0]
    wv, bv = lin(ks[6], _H2, 1)                     # prediction_value[0]

    return dict(w1=w1, b1=b1, w2=w2, b2=b2,
                wd1h=wd1[:_H2, :], wd1a=wd1[_H2:, :], bd1=bd1,
                wd2=wd2, bd2=bd2, wr=wr, br=br, wp=wp, bp=bp, wv=wv, bv=bv)


def pack_muzero_params(raw, compute_dtype=jnp.bfloat16):
    """Pack raw params into kernel-friendly fused / padded tensors."""
    state_size = raw["w1"].shape[0]
    action_size = raw["wp"].shape[1]
    assert action_size + 2 <= _LANE, "fused head requires action_size <= 126"
    s_pad = _round_up(state_size, _LANE)

    # representation layer 1, zero-padded to (S_pad, 128)
    w1_pad = jnp.zeros((s_pad, _LANE), jnp.float32).at[:state_size, :_H1].set(raw["w1"])
    # representation layer 2, zero-padded rows 64..127
    w2_pad = jnp.zeros((_LANE, _LANE), jnp.float32).at[:_H1, :].set(raw["w2"])

    # fused heads: [policy | value | reward | zeros]
    head_w = jnp.zeros((_H2, _LANE), jnp.float32)
    head_w = head_w.at[:, :action_size].set(raw["wp"])
    head_w = head_w.at[:, action_size].set(raw["wv"][:, 0])
    head_w = head_w.at[:, action_size + 1].set(raw["wr"][:, 0])
    bh = jnp.zeros((1, _LANE), jnp.float32)
    bh = bh.at[0, :action_size].set(raw["bp"][0])
    bh = bh.at[0, action_size].set(raw["bv"][0, 0])
    bh = bh.at[0, action_size + 1].set(raw["br"][0, 0])

    # Fused dynamics tail (action path): one (128,256) RHS gives
    # [head_preact | hidden] from a single matmul on d.
    tail256 = jnp.concatenate([raw["wd2"] @ head_w, raw["wd2"]], axis=1)        # (128,256)
    b256 = jnp.concatenate([raw["bd2"] @ head_w + bh, raw["bd2"]], axis=1)      # (1,256)

    rows = jnp.zeros((8, 2 * _LANE), jnp.float32)
    rows = rows.at[_ROW_B1, :_H1].set(raw["b1"][0])
    rows = rows.at[_ROW_B2, :_LANE].set(raw["b2"][0])
    rows = rows.at[_ROW_BD1, :_LANE].set(raw["bd1"][0])
    rows = rows.at[_ROW_WD1A, :_LANE].set(raw["wd1a"][0])
    rows = rows.at[_ROW_BH, :_LANE].set(bh[0])
    rows = rows.at[_ROW_B256, :].set(b256[0])

    cdt = jnp.dtype(compute_dtype)
    weights = dict(
        w1=w1_pad.astype(cdt),
        sq2=jnp.stack([w2_pad, raw["wd1h"]], axis=0).astype(cdt),   # (2,128,128)
        tail256=tail256.astype(cdt),                                 # (128,256)
        head128=head_w.astype(cdt),                                  # (128,128)
        rows=rows,                                                   # biases stay f32
    )
    return dict(weights=weights, state_size=state_size,
                action_size=action_size, s_pad=s_pad, compute_dtype=cdt)


# ------------------------------- host wrapper -------------------------------

@functools.partial(jax.jit,
                   static_argnames=("apply_repr", "has_action",
                                    "state_size", "action_size"))
def _muzero_forward_impl(weights, x, a, *, apply_repr, has_action,
                         state_size, action_size):
    cdt = weights["sq2"].dtype                      # static at trace time
    B = x.shape[0]

    if apply_repr:
        s_pad = weights["w1"].shape[0]
        # Stash the action scalar in a zero-padded lane of x (w1 row there is 0,
        # so the first matmul is unchanged) -> one fewer input DMA stream.
        action_in_x = has_action and (s_pad > state_size)
        x = jnp.pad(x, ((0, 0), (0, s_pad - state_size)))
        if action_in_x:
            a_col = jnp.asarray(a, jnp.float32).reshape(-1, 1)
            x = x.at[:, state_size:state_size + 1].set(a_col)
        x_feat = s_pad
    else:
        action_in_x = False
        x_feat = _H2
    sep_action = has_action and not action_in_x

    # ----- VMEM-aware batch tiling (amortize ~0.35us per grid step) -----
    cap = _vmem_capacity_bytes()
    budget = min(cap, 128 << 20) // 2               # headroom for weights/scratch
    per_row = (x_feat * 4) * 2 + (2 * _H2 * 4) * 2  # double-buffered x + out slab
    if sep_action:
        per_row += 4 * 2
    tile_cap = max(8, min(2048, (budget // per_row) // 8 * 8))
    tile_b = min(tile_cap, _round_up(B, 8))
    b_pad = _round_up(B, tile_b)

    x = jnp.pad(x, ((0, b_pad - B), (0, 0)))

    inputs = [x]
    in_specs = [pl.BlockSpec((tile_b, x_feat), lambda b: (b, 0))]

    if sep_action:
        a2 = jnp.asarray(a, jnp.float32).reshape(-1, 1)            # .view(-1, 1)
        a2 = jnp.pad(a2, ((0, b_pad - B), (0, 0)))
        inputs.append(a2)
        in_specs.append(pl.BlockSpec((tile_b, 1), lambda b: (b, 0)))

    if apply_repr:
        inputs.append(weights["w1"])
        in_specs.append(pl.BlockSpec(weights["w1"].shape, lambda b: (0, 0)))
    if apply_repr or has_action:
        inputs.append(weights["sq2"])
        in_specs.append(pl.BlockSpec((2, _H2, _H2), lambda b: (0, 0, 0)))
    if has_action:
        inputs.append(weights["tail256"])
        in_specs.append(pl.BlockSpec((_H2, 2 * _H2), lambda b: (0, 0)))
    else:
        inputs.append(weights["head128"])
        in_specs.append(pl.BlockSpec((_H2, _H2), lambda b: (0, 0)))
    inputs.append(weights["rows"])
    in_specs.append(pl.BlockSpec((8, 2 * _H2), lambda b: (0, 0)))

    kernel = _build_kernel(apply_repr, has_action,
                           state_size if action_in_x else None,
                           action_size, jnp.dtype(cdt).name)

    # Raise scoped VMEM above the 16/32 MiB defaults but stay below physical.
    vmem_limit = min(int(cap * 0.9), 128 << 20)

    # NOTE(v7x): for large compute-bound batches, pltpu.CORE_PARALLEL (or a
    # pl.core_map tensorcore mesh) on this axis gives real 2-TC sharding;
    # plain "parallel" is a no-cost hint and safe on all generations.
    slab = pl.pallas_call(
        kernel,
        grid=(b_pad // tile_b,),
        out_shape=jax.ShapeDtypeStruct((b_pad, 2 * _H2), jnp.float32),
        in_specs=in_specs,
        out_specs=pl.BlockSpec((tile_b, 2 * _H2), lambda b: (b, 0)),
        compiler_params=pltpu.CompilerParams(
            dimension_semantics=("parallel",),
            vmem_limit_bytes=vmem_limit),
    )(*inputs)

    slab = slab[:B]
    policy = slab[:, :action_size]
    value = slab[:, action_size:action_size + 1]
    hidden = slab[:, _H2:]
    reward = slab[:, action_size + 1:action_size + 2] if has_action else None
    return policy, value, hidden, reward


def muzero_forward(packed, state=None, action=None, hidden_state=None):
    """Mirrors MuZeroNetwork.forward: returns (policy, value, hidden_state, reward)."""
    apply_repr = hidden_state is None
    has_action = action is not None
    x = jnp.asarray(state if apply_repr else hidden_state, jnp.float32)
    a = jnp.asarray(action, jnp.float32) if has_action else None
    return _muzero_forward_impl(packed["weights"], x, a,
                                apply_repr=apply_repr, has_action=has_action,
                                state_size=packed["state_size"],
                                action_size=packed["action_size"])


# ------------------------------ reference (plain JAX) ------------------------

def _reference_forward(raw, state=None, action=None, hidden_state=None):
    if hidden_state is None:
        h = jnp.maximum(state @ raw["w1"] + raw["b1"], 0.0)
        h = h @ raw["w2"] + raw["b2"]
    else:
        h = hidden_state
    if action is not None:
        a = jnp.asarray(action, jnp.float32).reshape(-1, 1)
        d = jnp.maximum(h @ raw["wd1h"] + a * raw["wd1a"] + raw["bd1"], 0.0)
        h = d @ raw["wd2"] + raw["bd2"]
        reward = jnp.maximum(h @ raw["wr"] + raw["br"], 0.0)
    else:
        reward = None
    policy = jax.nn.softmax(h @ raw["wp"] + raw["bp"], axis=-1)
    value = jnp.tanh(h @ raw["wv"] + raw["bv"])
    return policy, value, h, reward


# ----------------------------------- main -----------------------------------

if __name__ == "__main__":
    state_size, action_size, batch = 16, 4, 8

    key = jax.random.PRNGKey(0)
    k_params, k_state, k_action = jax.random.split(key, 3)

    raw = init_muzero_params(k_params, state_size, action_size)
    packed = pack_muzero_params(raw, compute_dtype=jnp.float32)   # exact path

    state = jax.random.normal(k_state, (batch, state_size), jnp.float32)
    action = jax.random.randint(k_action, (batch,), 0, action_size).astype(jnp.float32)

    # Path 1: state + action (representation -> dynamics -> heads)
    policy, value, hidden, reward = muzero_forward(packed, state, action=action)
    jax.block_until_ready((policy, value, hidden, reward))

    # Path 2: state only (representation -> heads, reward is None)
    policy0, value0, hidden0, reward0 = muzero_forward(packed, state)
    jax.block_until_ready((policy0, value0, hidden0))

    # Path 3: hidden_state + action (recurrent inference step)
    policy1, value1, hidden1, reward1 = muzero_forward(
        packed, action=action, hidden_state=hidden0)
    jax.block_until_ready((policy1, value1, hidden1, reward1))

    # ---- correctness checks vs plain-JAX reference (f32 path, tight) ----
    rp, rv, rh, rr = _reference_forward(raw, state, action=action)
    assert jnp.allclose(policy, rp, atol=1e-4)
    assert jnp.allclose(value, rv, atol=1e-4)
    assert jnp.allclose(hidden, rh, atol=1e-4)
    assert jnp.allclose(reward, rr, atol=1e-4)

    rp0, rv0, rh0, rr0 = _reference_forward(raw, state)
    assert rr0 is None and reward0 is None
    assert jnp.allclose(policy0, rp0, atol=1e-4)
    assert jnp.allclose(value0, rv0, atol=1e-4)
    assert jnp.allclose(hidden0, rh0, atol=1e-4)

    # Recurrent step: feed the SAME hidden into both kernel and reference.
    rp1, rv1, rh1, rr1 = _reference_forward(raw, action=action, hidden_state=hidden0)
    assert jnp.allclose(policy1, rp1, atol=1e-4)
    assert jnp.allclose(value1, rv1, atol=1e-4)
    assert jnp.allclose(hidden1, rh1, atol=1e-4)
    assert jnp.allclose(reward1, rr1, atol=1e-4)

    assert jnp.allclose(jnp.sum(policy, axis=-1), 1.0, atol=1e-5)
    assert jnp.allclose(jnp.sum(policy0, axis=-1), 1.0, atol=1e-5)

    # Repeated calls reuse the compiled executable (jit + lru_cache'd kernel).
    for _ in range(3):
        p2, v2, h2, r2 = muzero_forward(packed, action=action, hidden_state=hidden0)
    jax.block_until_ready((p2, v2, h2, r2))
    assert jnp.allclose(p2, policy1, atol=1e-6)

    # ---- default bf16 compute path (v6e/v7x MXU throughput); loose checks ----
    packed_bf16 = pack_muzero_params(raw)                         # bf16 default
    pb, vb, hb, rb = muzero_forward(packed_bf16, state, action=action)
    jax.block_until_ready((pb, vb, hb, rb))
    assert bool(jnp.all(jnp.isfinite(pb))) and bool(jnp.all(jnp.isfinite(hb)))
    assert jnp.allclose(jnp.sum(pb, axis=-1), 1.0, atol=1e-5)
    assert jnp.allclose(pb, rp, atol=5e-2)
    assert jnp.allclose(hb, rh, atol=5e-2, rtol=5e-2)

    print("KERNEL_OK")
</pallas_src>

<mosaic_0001>
module attributes {stable_mosaic.version = 11 : i64} {
  func.func @kernel(%arg0: i32, %arg1: memref<8x128xf32, #tpu.memory_space<vmem>>, %arg2: memref<128x128xf32, #tpu.memory_space<vmem>>, %arg3: memref<2x128x128xf32, #tpu.memory_space<vmem>>, %arg4: memref<128x256xf32, #tpu.memory_space<vmem>>, %arg5: memref<8x256xf32, #tpu.memory_space<vmem>>, %arg6: memref<8x256xf32, #tpu.memory_space<vmem>>) attributes {dimension_semantics = [#tpu.dimension_semantics<parallel>], iteration_bounds = array<i64: 1>, scalar_prefetch = 0 : i64, scratch_operands = 0 : i64, tpu.core_type = #tpu.core_type<tc>, window_params = [{transform_indices = @transform_0, window_bounds = array<i64: 8, 128>}, {pipeline_mode = #tpu.pipeline_mode<synchronous>, transform_indices = @transform_1, window_bounds = array<i64: 128, 128>}, {pipeline_mode = #tpu.pipeline_mode<synchronous>, transform_indices = @transform_2, window_bounds = array<i64: 2, 128, 128>}, {pipeline_mode = #tpu.pipeline_mode<synchronous>, transform_indices = @transform_3, window_bounds = array<i64: 128, 256>}, {pipeline_mode = #tpu.pipeline_mode<synchronous>, transform_indices = @transform_4, window_bounds = array<i64: 8, 256>}, {transform_indices = @transform_5, window_bounds = array<i64: 8, 256>}]} {
    %c0 = arith.constant 0 : index
    %c0_0 = arith.constant 0 : index
    %0 = vector.load %arg5[%c0, %c0_0] : memref<8x256xf32, #tpu.memory_space<vmem>>, vector<8x256xf32>
    %1 = vector.extract_strided_slice %0 {offsets = [0, 0], sizes = [1, 128], strides = [1, 1]} : vector<8x256xf32> to vector<1x128xf32>
    %2 = vector.extract_strided_slice %0 {offsets = [1, 0], sizes = [1, 128], strides = [1, 1]} : vector<8x256xf32> to vector<1x128xf32>
    %3 = vector.extract_strided_slice %0 {offsets = [2, 0], sizes = [1, 128], strides = [1, 1]} : vector<8x256xf32> to vector<1x128xf32>
    %4 = vector.extract_strided_slice %0 {offsets = [3, 0], sizes = [1, 128], strides = [1, 1]} : vector<8x256xf32> to vector<1x128xf32>
    %5 = vector.extract_strided_slice %0 {offsets = [5, 0], sizes = [1, 256], strides = [1, 1]} : vector<8x256xf32> to vector<1x256xf32>
    %c0_1 = arith.constant 0 : index
    %c0_2 = arith.constant 0 : index
    %6 = vector.load %arg1[%c0_1, %c0_2] : memref<8x128xf32, #tpu.memory_space<vmem>>, vector<8x128xf32>
    %c0_3 = arith.constant 0 : index
    %c0_4 = arith.constant 0 : index
    %7 = vector.load %arg2[%c0_3, %c0_4] : memref<128x128xf32, #tpu.memory_space<vmem>>, vector<128x128xf32>
    %cst = arith.constant dense<0.000000e+00> : vector<8x128xf32>
    %8 = tpu.matmul %6, %7, %cst {dimension_numbers = #tpu.dot_dimension_numbers<[1], [0], [0], [1], [0, 0, 1, 1], [], []>} : vector<8x128xf32>, vector<128x128xf32>, vector<8x128xf32> -> vector<8x128xf32>
    %9 = vector.broadcast %1 : vector<1x128xf32> to vector<8x128xf32>
    %10 = arith.addf %8, %9 : vector<8x128xf32>
    %cst_5 = arith.constant 0.000000e+00 : f32
    %11 = vector.broadcast %cst_5 : f32 to vector<8x128xf32>
    %12 = arith.maximumf %10, %11 : vector<8x128xf32>
    %c0_6 = arith.constant 0 : index
    %c0_7 = arith.constant 0 : index
    %c0_8 = arith.constant 0 : index
    %13 = vector.load %arg3[%c0_6, %c0_7, %c0_8] : memref<2x128x128xf32, #tpu.memory_space<vmem>>, vector<1x128x128xf32>
    %14 = vector.shape_cast %13 : vector<1x128x128xf32> to vector<128x128xf32>
    %cst_9 = arith.constant dense<0.000000e+00> : vector<8x128xf32>
    %15 = tpu.matmul %12, %14, %cst_9 {dimension_numbers = #tpu.dot_dimension_numbers<[1], [0], [0], [1], [0, 0, 1, 1], [], []>} : vector<8x128xf32>, vector<128x128xf32>, vector<8x128xf32> -> vector<8x128xf32>
    %16 = vector.broadcast %2 : vector<1x128xf32> to vector<8x128xf32>
    %17 = arith.addf %15, %16 : vector<8x128xf32>
    %c0_10 = arith.constant 0 : index
    %c16 = arith.constant 16 : index
    %18 = vector.load %arg1[%c0_10, %c16] : memref<8x128xf32, #tpu.memory_space<vmem>>, vector<8x1xf32>
    %c1 = arith.constant 1 : index
    %c0_11 = arith.constant 0 : index
    %c0_12 = arith.constant 0 : index
    %19 = vector.load %arg3[%c1, %c0_11, %c0_12] : memref<2x128x128xf32, #tpu.memory_space<vmem>>, vector<1x128x128xf32>
    %20 = vector.shape_cast %19 : vector<1x128x128xf32> to vector<128x128xf32>
    %cst_13 = arith.constant dense<0.000000e+00> : vector<8x128xf32>
    %21 = tpu.matmul %17, %20, %cst_13 {dimension_numbers = #tpu.dot_dimension_numbers<[1], [0], [0], [1], [0, 0, 1, 1], [], []>} : vector<8x128xf32>, vector<128x128xf32>, vector<8x128xf32> -> vector<8x128xf32>
    %22 = vector.broadcast %18 : vector<8x1xf32> to vector<8x128xf32>
    %23 = vector.broadcast %4 : vector<1x128xf32> to vector<8x128xf32>
    %24 = arith.mulf %22, %23 : vector<8x128xf32>
    %25 = arith.addf %21, %24 : vector<8x128xf32>
    %26 = vector.broadcast %3 : vector<1x128xf32> to vector<8x128xf32>
    %27 = arith.addf %25, %26 : vector<8x128xf32>
    %cst_14 = arith.constant 0.000000e+00 : f32
    %28 = vector.broadcast %cst_14 : f32 to vector<8x128xf32>
    %29 = arith.maximumf %27, %28 : vector<8x128xf32>
    %c0_15 = arith.constant 0 : index
    %c0_16 = arith.constant 0 : index
    %30 = vector.load %arg4[%c0_15, %c0_16] : memref<128x256xf32, #tpu.memory_space<vmem>>, vector<128x256xf32>
    %cst_17 = arith.constant dense<0.000000e+00> : vector<8x256xf32>
    %31 = tpu.matmul %29, %30, %cst_17 {dimension_numbers = #tpu.dot_dimension_numbers<[1], [0], [0], [1], [0, 0, 1, 1], [], []>} : vector<8x128xf32>, vector<128x256xf32>, vector<8x256xf32> -> vector<8x256xf32>
    %32 = vector.broadcast %5 : vector<1x256xf32> to vector<8x256xf32>
    %33 = arith.addf %31, %32 : vector<8x256xf32>
    %34 = vector.extract_strided_slice %33 {offsets = [0, 0], sizes = [8, 128], strides = [1, 1]} : vector<8x256xf32> to vector<8x128xf32>
    %35 = vector.extract_strided_slice %33 {offsets = [0, 128], sizes = [8, 128], strides = [1, 1]} : vector<8x256xf32> to vector<8x128xf32>
    %36 = tpu.iota {dimensions = array<i32: 1>} : vector<8x128xi32>
    %c4_i32 = arith.constant 4 : i32
    %37 = vector.broadcast %c4_i32 : i32 to vector<8x128xi32>
    %38 = arith.cmpi slt, %36, %37 : vector<8x128xi32>
    %cst_18 = arith.constant 0xFF800000 : f32
    %39 = vector.broadcast %cst_18 : f32 to vector<8x128xf32>
    %40 = arith.select %38, %34, %39 : vector<8x128xi1>, vector<8x128xf32>
    %cst_19 = arith.constant dense<0xFF800000> : vector<8xf32>
    %41 = vector.multi_reduction <maximumf>, %40, %cst_19 [1] : vector<8x128xf32> to vector<8xf32>
    %42 = vector.shape_cast %41 : vector<8xf32> to vector<8x1xf32>
    %43 = vector.broadcast %42 : vector<8x1xf32> to vector<8x128xf32>
    %44 = arith.subf %40, %43 : vector<8x128xf32>
    %45 = math.exp %44 : vector<8x128xf32>
    %cst_20 = arith.constant dense<0.000000e+00> : vector<8xf32>
    %46 = vector.multi_reduction <add>, %45, %cst_20 [1] : vector<8x128xf32> to vector<8xf32>
    %47 = vector.shape_cast %46 : vector<8xf32> to vector<8x1xf32>
    %48 = vector.broadcast %47 : vector<8x1xf32> to vector<8x128xf32>
    %49 = arith.divf %45, %48 : vector<8x128xf32>
    %c4_i32_21 = arith.constant 4 : i32
    %50 = vector.broadcast %c4_i32_21 : i32 to vector<8x128xi32>
    %51 = arith.cmpi eq, %36, %50 : vector<8x128xi32>
    %52 = math.tanh %34 : vector<8x128xf32>
    %c5_i32 = arith.constant 5 : i32
    %53 = vector.broadcast %c5_i32 : i32 to vector<8x128xi32>
    %54 = arith.cmpi eq, %36, %53 : vector<8x128xi32>
    %cst_22 = arith.constant 0.000000e+00 : f32
    %55 = vector.broadcast %cst_22 : f32 to vector<8x128xf32>
    %56 = arith.maximumf %34, %55 : vector<8x128xf32>
    %cst_23 = arith.constant 0.000000e+00 : f32
    %57 = vector.broadcast %cst_23 : f32 to vector<8x128xf32>
    %58 = arith.select %54, %56, %57 : vector<8x128xi1>, vector<8x128xf32>
    %59 = arith.select %51, %52, %58 : vector<8x128xi1>, vector<8x128xf32>
    %60 = arith.select %38, %49, %59 : vector<8x128xi1>, vector<8x128xf32>
    %c0_24 = arith.constant 0 : index
    %c0_25 = arith.constant 0 : index
    %61 = vector.load %arg6[%c0_24, %c0_25] : memref<8x256xf32, #tpu.memory_space<vmem>>, vector<8x128xf32>
    tpu.vector_store %arg6[%c0_24, %c0_25], %60 {strides = array<i32>} : memref<8x256xf32, #tpu.memory_space<vmem>>, vector<8x128xf32>,
    %c0_26 = arith.constant 0 : index
    %c128 = arith.constant 128 : index
    %62 = vector.load %arg6[%c0_26, %c128] : memref<8x256xf32, #tpu.memory_space<vmem>>, vector<8x128xf32>
    tpu.vector_store %arg6[%c0_26, %c128], %35 {strides = array<i32>} : memref<8x256xf32, #tpu.memory_space<vmem>>, vector<8x128xf32>,
    return
  }
  func.func @transform_0(%arg0: i32) -> (i32, i32) {
    %c0_i32 = arith.constant 0 : i32
    %c0_i32_0 = arith.constant 0 : i32
    return %arg0, %c0_i32 : i32, i32
  }
  func.func @transform_1(%arg0: i32) -> (i32, i32) {
    %c0_i32 = arith.constant 0 : i32
    %c0_i32_0 = arith.constant 0 : i32
    %c0_i32_1 = arith.constant 0 : i32
    return %c0_i32, %c0_i32_0 : i32, i32
  }
  func.func @transform_2(%arg0: i32) -> (i32, i32, i32) {
    %c0_i32 = arith.constant 0 : i32
    %c0_i32_0 = arith.constant 0 : i32
    %c0_i32_1 = arith.constant 0 : i32
    %c0_i32_2 = arith.constant 0 : i32
    return %c0_i32, %c0_i32_0, %c0_i32_1 : i32, i32, i32
  }
  func.func @transform_3(%arg0: i32) -> (i32, i32) {
    %c0_i32 = arith.constant 0 : i32
    %c0_i32_0 = arith.constant 0 : i32
    %c0_i32_1 = arith.constant 0 : i32
    return %c0_i32, %c0_i32_0 : i32, i32
  }
  func.func @transform_4(%arg0: i32) -> (i32, i32) {
    %c0_i32 = arith.constant 0 : i32
    %c0_i32_0 = arith.constant 0 : i32
    %c0_i32_1 = arith.constant 0 : i32
    return %c0_i32, %c0_i32_0 : i32, i32
  }
  func.func @transform_5(%arg0: i32) -> (i32, i32) {
    %c0_i32 = arith.constant 0 : i32
    %c0_i32_0 = arith.constant 0 : i32
    return %arg0, %c0_i32 : i32, i32
  }
}

</mosaic_0001>

<llo_original>
// kernel: _muzero_forward_impl.1
$region0: #{_muzero_forward_impl.1}
  #allocation0 [shape = 'u32[]', space=smem, size = 0x4, offset = 0x4, fixed_abs, tag = 'smem constant byte address 0x4 - core index']
  #allocation1 [shape = 'u32[144,128]{1,0:T(1,128)}', space=vmem, size = 0x12000, scoped, tag = 'internal scratch']
  %s0 = inlined_call_operand.vmem [shape: f32[8,128], index: 0, kind: input, shape index: {}]
  %s1 = inlined_call_operand.hbm [shape: f32[128,128], index: 1, kind: input, shape index: {}]
  %s2 = inlined_call_operand.hbm [shape: f32[2,128,128], index: 2, kind: input, shape index: {}]
  %s3 = inlined_call_operand.hbm [shape: f32[128,256], index: 3, kind: input, shape index: {}]
  %s4 = inlined_call_operand.vmem [shape: f32[8,256], index: 4, kind: input, shape index: {}]
  %s5 = inlined_call_operand.vmem [shape: f32[8,256], index: 5, kind: output, shape index: {}]
  %s6 = sld [smem:[#allocation0]]
  $region42: #{_muzero_forward_impl.1} parent=0
    _
  %s8 = ssub.s32 1, %s6
  %s9 = scalar_select 0, %s8, %s6
  $region1: #{_muzero_forward_impl.1} parent=0
    #allocation2 [shape = 'u8[65536]{0}', space=vmem, size = 0x10000, scoped, tag = 'input window, operand 1, single buffered']
    #allocation3 [shape = 's32[1]{0}', space=sflag, size = 0x4, scoped, tag = 'scoped memory for _muzero_forward_impl.1']
    #allocation4 [shape = 'u8[131072]{0}', space=vmem, size = 0x20000, scoped, tag = 'input window, operand 2, single buffered']
    #allocation5 [shape = 's32[1]{0}', space=sflag, size = 0x4, scoped, tag = 'scoped memory for _muzero_forward_impl.1']
    #allocation6 [shape = 'u8[131072]{0}', space=vmem, size = 0x20000, scoped, tag = 'input window, operand 3, single buffered']
    %10 = vsyncpa [#allocation3], 0
    %11 = vsyncpa [#allocation5], 0
    // Predicated region
    $region2: #{_muzero_forward_impl.1} parent=1 // pred_check
      _
    $region3: #{_muzero_forward_impl.1} parent=1 // pred_check_branch
      %13 = sbr.rel (0) target = $region5
    $region4: #{_muzero_forward_impl.1} parent=1 // pred_region
      _
    $region5: #{_muzero_forward_impl.1} parent=1 // pred_fallthru
      _
    // Predicated region
    $region6: #{_muzero_forward_impl.1} parent=1 // pred_check
      _
    $region7: #{_muzero_forward_impl.1} parent=1 // pred_check_branch
      %15 = sbr.rel (0) target = $region9
    $region8: #{_muzero_forward_impl.1} parent=1 // pred_region
      %s17 = ssub.s32 2048, 2048
      %18 = vsyncadd [#allocation3], %s17
      %s19 = sshll.u32 [#allocation2], 4
      %s20 = int_to_ptr.vmem [resolvable:$true] %s19
      %25 = dma.hbm_to_vmem [thread:$0]  %s1, 2048, %s20, [#allocation3], 128, 128, 8
    $region9: #{_muzero_forward_impl.1} parent=1 // pred_fallthru
      _
    // Predicated region
    $region10: #{_muzero_forward_impl.1} parent=1 // pred_check
      _
    $region11: #{_muzero_forward_impl.1} parent=1 // pred_check_branch
      %27 = sbr.rel (0) target = $region13
    $region12: #{_muzero_forward_impl.1} parent=1 // pred_region
      %s29 = ssub.s32 4096, 4096
      %30 = vsyncadd [#allocation5], %s29
      %s31 = sshll.u32 [#allocation4], 4
      %s32 = int_to_ptr.vmem [resolvable:$true] %s31
      %37 = dma.hbm_to_vmem [thread:$0]  %s2, 4096, %s32, [#allocation5], 128, 128, 8
    $region13: #{_muzero_forward_impl.1} parent=1 // pred_fallthru
      _
    // Predicated region
    $region14: #{_muzero_forward_impl.1} parent=1 // pred_check
      _
    $region15: #{_muzero_forward_impl.1} parent=1 // pred_check_branch
      %39 = sbr.rel (0) target = $region17
    $region16: #{_muzero_forward_impl.1} parent=1 // pred_region
      %s41 = ssub.s32 4096, 4096
      %42 = vsyncadd [#allocation5], %s41
      %s43 = sshll.u32 [#allocation6], 4
      %s44 = int_to_ptr.vmem [resolvable:$true] %s43
      %49 = dma.hbm_to_vmem [thread:$0]  %s3, 4096, %s44, [#allocation5], 256, 256, 16
    $region17: #{_muzero_forward_impl.1} parent=1 // pred_fallthru
      _
    // Predicated region
    $region18: #{_muzero_forward_impl.1} parent=1 // pred_check
      _
    $region19: #{_muzero_forward_impl.1} parent=1 // pred_check_branch
      %51 = sbr.rel (0) target = $region21
    $region20: #{_muzero_forward_impl.1} parent=1 // pred_region
      _
    $region21: #{_muzero_forward_impl.1} parent=1 // pred_fallthru
      _
    // Predicated region
    $region22: #{_muzero_forward_impl.1} parent=1 // pred_check
      _
    $region23: #{_muzero_forward_impl.1} parent=1 // pred_check_branch
      %53 = sbr.rel (0) target = $region25
    $region24: #{_muzero_forward_impl.1} parent=1 // pred_region
      %54 = dma.done [#allocation3], 2048
    $region25: #{_muzero_forward_impl.1} parent=1 // pred_fallthru
      _
    // Predicated region
    $region26: #{_muzero_forward_impl.1} parent=1 // pred_check
      _
    $region27: #{_muzero_forward_impl.1} parent=1 // pred_check_branch
      %56 = sbr.rel (0) target = $region29
    $region28: #{_muzero_forward_impl.1} parent=1 // pred_region
      %57 = dma.done [#allocation5], 4096
    $region29: #{_muzero_forward_impl.1} parent=1 // pred_fallthru
      _
    // Predicated region
    $region30: #{_muzero_forward_impl.1} parent=1 // pred_check
      _
    $region31: #{_muzero_forward_impl.1} parent=1 // pred_check_branch
      %59 = sbr.rel (0) target = $region33
    $region32: #{_muzero_forward_impl.1} parent=1 // pred_region
      %60 = dma.done [#allocation5], 4096
    $region33: #{_muzero_forward_impl.1} parent=1 // pred_fallthru
      _
    %v61 = vld [vmem:[%s4] sm:$0xff]
    %v62 = vld [vmem:[%s4 + $0x8] sm:$0xff]
    %v63 = vld [vmem:[%s0] sm:$0xff]
    %v64 = vld [vmem:[#allocation2] sm:$0xff]
    %v65 = vld [vmem:[#allocation2 + $0x8] sm:$0xff]
    %v66 = vld [vmem:[#allocation2 + $0x10] sm:$0xff]
    %v67 = vld [vmem:[#allocation2 + $0x18] sm:$0xff]
    %v68 = vld [vmem:[#allocation2 + $0x20] sm:$0xff]
    %v69 = vld [vmem:[#allocation2 + $0x28] sm:$0xff]
    %v70 = vld [vmem:[#allocation2 + $0x30] sm:$0xff]
    %v71 = vld [vmem:[#allocation2 + $0x38] sm:$0xff]
    %v72 = vld [vmem:[#allocation2 + $0x40] sm:$0xff]
    %v73 = vld [vmem:[#allocation2 + $0x48] sm:$0xff]
    %v74 = vld [vmem:[#allocation2 + $0x50] sm:$0xff]
    %v75 = vld [vmem:[#allocation2 + $0x58] sm:$0xff]
    %v76 = vld [vmem:[#allocation2 + $0x60] sm:$0xff]
    %v77 = vld [vmem:[#allocation2 + $0x68] sm:$0xff]
    %v78 = vld [vmem:[#allocation2 + $0x70] sm:$0xff]
    %v79 = vld [vmem:[#allocation2 + $0x78] sm:$0xff]
    %v80 = vlaneseq
    %v81 = vshrl.u32 %v80, 7
    %v82 = vsub.s32 0, %v81
    %v83 = vrot.slane %v61, %v82
    %84 = vmatprep.subr.mxu0 0.0
    %85 = vmatpush1.msra.mxu0 %v64
    %86 = vmatprep.subr.mxu0 0.0
    %87 = vmatpush1.msra.mxu0 %v65
    %88 = vmatprep.subr.mxu0 0.0
    %89 = vmatpush1.msra.mxu0 %v66
    %90 = vmatprep.subr.mxu0 0.0
    %91 = vmatpush1.msra.mxu0 %v67
    %92 = vmatprep.subr.mxu0 0.0
    %93 = vmatpush1.msra.mxu0 %v68
    %94 = vmatprep.subr.mxu0 0.0
    %95 = vmatpush1.msra.mxu0 %v69
    %96 = vmatprep.subr.mxu0 0.0
    %97 = vmatpush1.msra.mxu0 %v70
    %98 = vmatprep.subr.mxu0 0.0
    %99 = vmatpush1.msra.mxu0 %v71
    %100 = vmatprep.subr.mxu0 0.0
    %101 = vmatpush1.msra.mxu0 %v72
    %102 = vmatprep.subr.mxu0 0.0
    %103 = vmatpush1.msra.mxu0 %v73
    %104 = vmatprep.subr.mxu0 0.0
    %105 = vmatpush1.msra.mxu0 %v74
    %106 = vmatprep.subr.mxu0 0.0
    %107 = vmatpush1.msra.mxu0 %v75
    %108 = vmatprep.subr.mxu0 0.0
    %109 = vmatpush1.msra.mxu0 %v76
    %110 = vmatprep.subr.mxu0 0.0
    %111 = vmatpush1.msra.mxu0 %v77
    %112 = vmatprep.subr.mxu0 0.0
    %113 = vmatpush1.msra.mxu0 %v78
    %114 = vmatprep.subr.mxu0 0.0
    %115 = vmatpush1.msra.mxu0 %v79
    %116 = vmatprep.subr.mxu0 0.0
    %117 = vmatpush1.msra.mxu0 0.0
    %118 = vmatprep.subr.mxu0 0.0
    %119 = vmatpush1.msra.mxu0 0.0
    %120 = vmatprep.subr.mxu0 0.0
    %121 = vmatpush1.msra.mxu0 0.0
    %122 = vmatprep.subr.mxu0 0.0
    %123 = vmatpush1.msra.mxu0 0.0
    %124 = vmatprep.subr.mxu0 0.0
    %125 = vmatpush1.msra.mxu0 0.0
    %126 = vmatprep.subr.mxu0 0.0
    %127 = vmatpush1.msra.mxu0 0.0
    %128 = vmatprep.subr.mxu0 0.0
    %129 = vmatpush1.msra.mxu0 0.0
    %130 = vmatprep.subr.mxu0 0.0
    %131 = vmatpush1.msra.mxu0 0.0
    %132 = vmatprep.subr.mxu0 0.0
    %133 = vmatpush1.msra.mxu0 0.0
    %134 = vmatprep.subr.mxu0 0.0
    %135 = vmatpush1.msra.mxu0 0.0
    %136 = vmatprep.subr.mxu0 0.0
    %137 = vmatpush1.msra.mxu0 0.0
    %138 = vmatprep.subr.mxu0 0.0
    %139 = vmatpush1.msra.mxu0 0.0
    %140 = vmatprep.subr.mxu0 0.0
    %141 = vmatpush1.msra.mxu0 0.0
    %142 = vmatprep.subr.mxu0 0.0
    %143 = vmatpush1.msra.mxu0 0.0
    %144 = vmatprep.subr.mxu0 0.0
    %145 = vmatpush1.msra.mxu0 0.0
    %146 = vmatprep.subr.mxu0 0.0
    %147 = vmatpush1.msra.mxu0 0.0
    %148 = vmatprep.mubr.f32.mxu0 0.0
    %149 = vmatmul.mubr.f32.gmra.mrb[0].mxu0 %v63
    %v150 = vpop.f32.mrb[0].mxu0
    %v151 = vadd.f32 %v83, %v150
    %v152 = vpop.f32.mrb[0].mxu0
    %153 = vdwg.mxu0
    %v154 = vmax.f32 %v151, 0.0
    %v155 = vld [vmem:[#allocation4] sm:$0xff]
    %v156 = vld [vmem:[#allocation4 + $0x8] sm:$0xff]
    %v157 = vld [vmem:[#allocation4 + $0x10] sm:$0xff]
    %v158 = vld [vmem:[#allocation4 + $0x18] sm:$0xff]
    %v159 = vld [vmem:[#allocation4 + $0x20] sm:$0xff]
    %v160 = vld [vmem:[#allocation4 + $0x28] sm:$0xff]
    %v161 = vld [vmem:[#allocation4 + $0x30] sm:$0xff]
    %v162 = vld [vmem:[#allocation4 + $0x38] sm:$0xff]
    %v163 = vld [vmem:[#allocation4 + $0x40] sm:$0xff]
    %v164 = vld [vmem:[#allocation4 + $0x48] sm:$0xff]
    %v165 = vld [vmem:[#allocation4 + $0x50] sm:$0xff]
    %v166 = vld [vmem:[#allocation4 + $0x58] sm:$0xff]
    %v167 = vld [vmem:[#allocation4 + $0x60] sm:$0xff]
    %v168 = vld [vmem:[#allocation4 + $0x68] sm:$0xff]
    %v169 = vld [vmem:[#allocation4 + $0x70] sm:$0xff]
    %v170 = vld [vmem:[#allocation4 + $0x78] sm:$0xff]
    %v171 = vlaneseq
    %v172 = vshrl.u32 %v171, 7
    %v173 = vsub.s32 1, %v172
    %v174 = vrot.slane %v61, %v173
    %175 = vmatprep.subr.mxu0 0.0
    %176 = vmatpush1.msra.mxu0 %v155
    %177 = vmatprep.subr.mxu0 0.0
    %178 = vmatpush1.msra.mxu0 %v156
    %179 = vmatprep.subr.mxu0 0.0
    %180 = vmatpush1.msra.mxu0 %v157
    %181 = vmatprep.subr.mxu0 0.0
    %182 = vmatpush1.msra.mxu0 %v158
    %183 = vmatprep.subr.mxu0 0.0
    %184 = vmatpush1.msra.mxu0 %v159
    %185 = vmatprep.subr.mxu0 0.0
    %186 = vmatpush1.msra.mxu0 %v160
    %187 = vmatprep.subr.mxu0 0.0
    %188 = vmatpush1.msra.mxu0 %v161
    %189 = vmatprep.subr.mxu0 0.0
    %190 = vmatpush1.msra.mxu0 %v162
    %191 = vmatprep.subr.mxu0 0.0
    %192 = vmatpush1.msra.mxu0 %v163
    %193 = vmatprep.subr.mxu0 0.0
    %194 = vmatpush1.msra.mxu0 %v164
    %195 = vmatprep.subr.mxu0 0.0
    %196 = vmatpush1.msra.mxu0 %v165
    %197 = vmatprep.subr.mxu0 0.0
    %198 = vmatpush1.msra.mxu0 %v166
    %199 = vmatprep.subr.mxu0 0.0
    %200 = vmatpush1.msra.mxu0 %v167
    %201 = vmatprep.subr.mxu0 0.0
    %202 = vmatpush1.msra.mxu0 %v168
    %203 = vmatprep.subr.mxu0 0.0
    %204 = vmatpush1.msra.mxu0 %v169
    %205 = vmatprep.subr.mxu0 0.0
    %206 = vmatpush1.msra.mxu0 %v170
    %207 = vmatprep.subr.mxu0 0.0
    %208 = vmatpush1.msra.mxu0 0.0
    %209 = vmatprep.subr.mxu0 0.0
    %210 = vmatpush1.msra.mxu0 0.0
    %211 = vmatprep.subr.mxu0 0.0
    %212 = vmatpush1.msra.mxu0 0.0
    %213 = vmatprep.subr.mxu0 0.0
    %214 = vmatpush1.msra.mxu0 0.0
    %215 = vmatprep.subr.mxu0 0.0
    %216 = vmatpush1.msra.mxu0 0.0
    %217 = vmatprep.subr.mxu0 0.0
    %218 = vmatpush1.msra.mxu0 0.0
    %219 = vmatprep.subr.mxu0 0.0
    %220 = vmatpush1.msra.mxu0 0.0
    %221 = vmatprep.subr.mxu0 0.0
    %222 = vmatpush1.msra.mxu0 0.0
    %223 = vmatprep.subr.mxu0 0.0
    %224 = vmatpush1.msra.mxu0 0.0
    %225 = vmatprep.subr.mxu0 0.0
    %226 = vmatpush1.msra.mxu0 0.0
    %227 = vmatprep.subr.mxu0 0.0
    %228 = vmatpush1.msra.mxu0 0.0
    %229 = vmatprep.subr.mxu0 0.0
    %230 = vmatpush1.msra.mxu0 0.0
    %231 = vmatprep.subr.mxu0 0.0
    %232 = vmatpush1.msra.mxu0 0.0
    %233 = vmatprep.subr.mxu0 0.0
    %234 = vmatpush1.msra.mxu0 0.0
    %235 = vmatprep.subr.mxu0 0.0
    %236 = vmatpush1.msra.mxu0 0.0
    %237 = vmatprep.subr.mxu0 0.0
    %238 = vmatpush1.msra.mxu0 0.0
    %239 = vmatprep.mubr.f32.mxu0 0.0
    %240 = vmatmul.mubr.f32.gmra.mrb[0].mxu0 %v154
    %v241 = vpop.f32.mrb[0].mxu0
    %v242 = vadd.f32 %v174, %v241
    %v243 = vpop.f32.mrb[0].mxu0
    %244 = vdwg.mxu0
    %s245 = scalar_lea.vmem [#allocation4], 128
    %v246 = vld [vmem:[%s245] sm:$0xff]
    %v247 = vld [vmem:[%s245 + $0x8] sm:$0xff]
    %v248 = vld [vmem:[%s245 + $0x10] sm:$0xff]
    %v249 = vld [vmem:[%s245 + $0x18] sm:$0xff]
    %v250 = vld [vmem:[%s245 + $0x20] sm:$0xff]
    %v251 = vld [vmem:[%s245 + $0x28] sm:$0xff]
    %v252 = vld [vmem:[%s245 + $0x30] sm:$0xff]
    %v253 = vld [vmem:[%s245 + $0x38] sm:$0xff]
    %v254 = vld [vmem:[%s245 + $0x40] sm:$0xff]
    %v255 = vld [vmem:[%s245 + $0x48] sm:$0xff]
    %v256 = vld [vmem:[%s245 + $0x50] sm:$0xff]
    %v257 = vld [vmem:[%s245 + $0x58] sm:$0xff]
    %v258 = vld [vmem:[%s245 + $0x60] sm:$0xff]
    %v259 = vld [vmem:[%s245 + $0x68] sm:$0xff]
    %v260 = vld [vmem:[%s245 + $0x70] sm:$0xff]
    %v261 = vld [vmem:[%s245 + $0x78] sm:$0xff]
    %263 = vset.pattern.permute.xlu0 16
    %264 = vperm.xlu0 %263, %v63
    %v265 = vpop.permute.xlu0 %264
    %v267 = vlaneseq
    %v268 = vshrl.u32 %v267, 7
    %v269 = vsub.s32 3, %v268
    %v270 = vrot.slane %v61, %v269
    %v271 = vmul.f32 %v265, %v270
    %272 = vmatprep.subr.mxu0 0.0
    %273 = vmatpush1.msra.mxu0 %v246
    %274 = vmatprep.subr.mxu0 0.0
    %275 = vmatpush1.msra.mxu0 %v247
    %276 = vmatprep.subr.mxu0 0.0
    %277 = vmatpush1.msra.mxu0 %v248
    %278 = vmatprep.subr.mxu0 0.0
    %279 = vmatpush1.msra.mxu0 %v249
    %280 = vmatprep.subr.mxu0 0.0
    %281 = vmatpush1.msra.mxu0 %v250
    %282 = vmatprep.subr.mxu0 0.0
    %283 = vmatpush1.msra.mxu0 %v251
    %284 = vmatprep.subr.mxu0 0.0
    %285 = vmatpush1.msra.mxu0 %v252
    %286 = vmatprep.subr.mxu0 0.0
    %287 = vmatpush1.msra.mxu0 %v253
    %288 = vmatprep.subr.mxu0 0.0
    %289 = vmatpush1.msra.mxu0 %v254
    %290 = vmatprep.subr.mxu0 0.0
    %291 = vmatpush1.msra.mxu0 %v255
    %292 = vmatprep.subr.mxu0 0.0
    %293 = vmatpush1.msra.mxu0 %v256
    %294 = vmatprep.subr.mxu0 0.0
    %295 = vmatpush1.msra.mxu0 %v257
    %296 = vmatprep.subr.mxu0 0.0
    %297 = vmatpush1.msra.mxu0 %v258
    %298 = vmatprep.subr.mxu0 0.0
    %299 = vmatpush1.msra.mxu0 %v259
    %300 = vmatprep.subr.mxu0 0.0
    %301 = vmatpush1.msra.mxu0 %v260
    %302 = vmatprep.subr.mxu0 0.0
    %303 = vmatpush1.msra.mxu0 %v261
    %304 = vmatprep.subr.mxu0 0.0
    %305 = vmatpush1.msra.mxu0 0.0
    %306 = vmatprep.subr.mxu0 0.0
    %307 = vmatpush1.msra.mxu0 0.0
    %308 = vmatprep.subr.mxu0 0.0
    %309 = vmatpush1.msra.mxu0 0.0
    %310 = vmatprep.subr.mxu0 0.0
    %311 = vmatpush1.msra.mxu0 0.0
    %312 = vmatprep.subr.mxu0 0.0
    %313 = vmatpush1.msra.mxu0 0.0
    %314 = vmatprep.subr.mxu0 0.0
    %315 = vmatpush1.msra.mxu0 0.0
    %316 = vmatprep.subr.mxu0 0.0
    %317 = vmatpush1.msra.mxu0 0.0
    %318 = vmatprep.subr.mxu0 0.0
    %319 = vmatpush1.msra.mxu0 0.0
    %320 = vmatprep.subr.mxu0 0.0
    %321 = vmatpush1.msra.mxu0 0.0
    %322 = vmatprep.subr.mxu0 0.0
    %323 = vmatpush1.msra.mxu0 0.0
    %324 = vmatprep.subr.mxu0 0.0
    %325 = vmatpush1.msra.mxu0 0.0
    %326 = vmatprep.subr.mxu0 0.0
    %327 = vmatpush1.msra.mxu0 0.0
    %328 = vmatprep.subr.mxu0 0.0
    %329 = vmatpush1.msra.mxu0 0.0
    %330 = vmatprep.subr.mxu0 0.0
    %331 = vmatpush1.msra.mxu0 0.0
    %332 = vmatprep.subr.mxu0 0.0
    %333 = vmatpush1.msra.mxu0 0.0
    %334 = vmatprep.subr.mxu0 0.0
    %335 = vmatpush1.msra.mxu0 0.0
    %336 = vmatprep.mubr.f32.mxu0 0.0
    %337 = vmatmul.mubr.f32.gmra.mrb[0].mxu0 %v242
    %v338 = vpop.f32.mrb[0].mxu0
    %v339 = vadd.f32 %v271, %v338
    %v340 = vpop.f32.mrb[0].mxu0
    %341 = vdwg.mxu0
    %v342 = vlaneseq
    %v343 = vshrl.u32 %v342, 7
    %v344 = vsub.s32 2, %v343
    %v345 = vrot.slane %v61, %v344
    %v346 = vadd.f32 %v339, %v345
    %v347 = vmax.f32 %v346, 0.0
    %v348 = vld [vmem:[#allocation6] sm:$0xff]
    %v349 = vld [vmem:[#allocation6 + $0x8] sm:$0xff]
    %v350 = vld [vmem:[#allocation6 + $0x10] sm:$0xff]
    %v351 = vld [vmem:[#allocation6 + $0x18] sm:$0xff]
    %v352 = vld [vmem:[#allocation6 + $0x20] sm:$0xff]
    %v353 = vld [vmem:[#allocation6 + $0x28] sm:$0xff]
    %v354 = vld [vmem:[#allocation6 + $0x30] sm:$0xff]
    %v355 = vld [vmem:[#allocation6 + $0x38] sm:$0xff]
    %v356 = vld [vmem:[#allocation6 + $0x40] sm:$0xff]
    %v357 = vld [vmem:[#allocation6 + $0x48] sm:$0xff]
    %v358 = vld [vmem:[#allocation6 + $0x50] sm:$0xff]
    %v359 = vld [vmem:[#allocation6 + $0x58] sm:$0xff]
    %v360 = vld [vmem:[#allocation6 + $0x60] sm:$0xff]
    %v361 = vld [vmem:[#allocation6 + $0x68] sm:$0xff]
    %v362 = vld [vmem:[#allocation6 + $0x70] sm:$0xff]
    %v363 = vld [vmem:[#allocation6 + $0x78] sm:$0xff]
    %v364 = vld [vmem:[#allocation6 + $0x80] sm:$0xff]
    %v365 = vld [vmem:[#allocation6 + $0x88] sm:$0xff]
    %v366 = vld [vmem:[#allocation6 + $0x90] sm:$0xff]
    %v367 = vld [vmem:[#allocation6 + $0x98] sm:$0xff]
    %v368 = vld [vmem:[#allocation6 + $0xa0] sm:$0xff]
    %v369 = vld [vmem:[#allocation6 + $0xa8] sm:$0xff]
    %v370 = vld [vmem:[#allocation6 + $0xb0] sm:$0xff]
    %v371 = vld [vmem:[#allocation6 + $0xb8] sm:$0xff]
    %v372 = vld [vmem:[#allocation6 + $0xc0] sm:$0xff]
    %v373 = vld [vmem:[#allocation6 + $0xc8] sm:$0xff]
    %v374 = vld [vmem:[#allocation6 + $0xd0] sm:$0xff]
    %v375 = vld [vmem:[#allocation6 + $0xd8] sm:$0xff]
    %v376 = vld [vmem:[#allocation6 + $0xe0] sm:$0xff]
    %v377 = vld [vmem:[#allocation6 + $0xe8] sm:$0xff]
    %v378 = vld [vmem:[#allocation6 + $0xf0] sm:$0xff]
    %v379 = vld [vmem:[#allocation6 + $0xf8] sm:$0xff]
    %v380 = vlaneseq
    %v381 = vshrl.u32 %v380, 7
    %v382 = vsub.s32 5, %v381
    %v383 = vrot.slane %v61, %v382
    %v384 = vlaneseq
    %v385 = vshrl.u32 %v384, 7
    %v386 = vsub.s32 5, %v385
    %v387 = vrot.slane %v62, %v386
    %388 = vmatprep.subr.mxu0 %v349
    %389 = vmatpush1.msra.mxu0 %v348
    %390 = vmatprep.subr.mxu0 %v351
    %391 = vmatpush1.msra.mxu0 %v350
    %392 = vmatprep.subr.mxu0 %v353
    %393 = vmatpush1.msra.mxu0 %v352
    %394 = vmatprep.subr.mxu0 %v355
    %395 = vmatpush1.msra.mxu0 %v354
    %396 = vmatprep.subr.mxu0 %v357
    %397 = vmatpush1.msra.mxu0 %v356
    %398 = vmatprep.subr.mxu0 %v359
    %399 = vmatpush1.msra.mxu0 %v358
    %400 = vmatprep.subr.mxu0 %v361
    %401 = vmatpush1.msra.mxu0 %v360
    %402 = vmatprep.subr.mxu0 %v363
    %403 = vmatpush1.msra.mxu0 %v362
    %404 = vmatprep.subr.mxu0 %v365
    %405 = vmatpush1.msra.mxu0 %v364
    %406 = vmatprep.subr.mxu0 %v367
    %407 = vmatpush1.msra.mxu0 %v366
    %408 = vmatprep.subr.mxu0 %v369
    %409 = vmatpush1.msra.mxu0 %v368
    %410 = vmatprep.subr.mxu0 %v371
    %411 = vmatpush1.msra.mxu0 %v370
    %412 = vmatprep.subr.mxu0 %v373
    %413 = vmatpush1.msra.mxu0 %v372
    %414 = vmatprep.subr.mxu0 %v375
    %415 = vmatpush1.msra.mxu0 %v374
    %416 = vmatprep.subr.mxu0 %v377
    %417 = vmatpush1.msra.mxu0 %v376
    %418 = vmatprep.subr.mxu0 %v379
    %419 = vmatpush1.msra.mxu0 %v378
    %420 = vmatprep.subr.mxu0 0.0
    %421 = vmatpush1.msra.mxu0 0.0
    %422 = vmatprep.subr.mxu0 0.0
    %423 = vmatpush1.msra.mxu0 0.0
    %424 = vmatprep.subr.mxu0 0.0
    %425 = vmatpush1.msra.mxu0 0.0
    %426 = vmatprep.subr.mxu0 0.0
    %427 = vmatpush1.msra.mxu0 0.0
    %428 = vmatprep.subr.mxu0 0.0
    %429 = vmatpush1.msra.mxu0 0.0
    %430 = vmatprep.subr.mxu0 0.0
    %431 = vmatpush1.msra.mxu0 0.0
    %432 = vmatprep.subr.mxu0 0.0
    %433 = vmatpush1.msra.mxu0 0.0
    %434 = vmatprep.subr.mxu0 0.0
    %435 = vmatpush1.msra.mxu0 0.0
    %436 = vmatprep.subr.mxu0 0.0
    %437 = vmatpush1.msra.mxu0 0.0
    %438 = vmatprep.subr.mxu0 0.0
    %439 = vmatpush1.msra.mxu0 0.0
    %440 = vmatprep.subr.mxu0 0.0
    %441 = vmatpush1.msra.mxu0 0.0
    %442 = vmatprep.subr.mxu0 0.0
    %443 = vmatpush1.msra.mxu0 0.0
    %444 = vmatprep.subr.mxu0 0.0
    %445 = vmatpush1.msra.mxu0 0.0
    %446 = vmatprep.subr.mxu0 0.0
    %447 = vmatpush1.msra.mxu0 0.0
    %448 = vmatprep.subr.mxu0 0.0
    %449 = vmatpush1.msra.mxu0 0.0
    %450 = vmatprep.subr.mxu0 0.0
    %451 = vmatpush1.msra.mxu0 0.0
    %452 = vmatprep.mubr.f32.mxu0 0.0
    %453 = vmatmul.mubr.f32.gmra.mrb[0].mxu0 %v347
    %v454 = vpop.f32.mrb[0].mxu0
    %v455 = vadd.f32 %v383, %v454
    %v456 = vpop.f32.mrb[0].mxu0
    %v457 = vadd.f32 %v387, %v456
    %458 = vdwg.mxu0
    %v459 = vlaneseq
    %v460 = vand.u32 %v459, 127
    %vm461 = vcmp.lt.s32.totalorder %v460, 4
    %v462 = vsel %vm461, %v455, -inf
    %463 = vmax.xlane.f32.xlu0 %v462
    %v464 = vpop.xlane.xlu0 %463
    %v465 = vsub.f32 %v462, %v464
    %v466 = vmul.f32 %v465, 1.442695
    %v467 = vpow.pop %v466
    %468 = vadd.xlane.f32.xlu0 %v467
    %v469 = vpop.xlane.xlu0 %468
    %v470 = vrcp.pop %v469
    %v471 = vmul.f32 %v467, %v470
    %vm472 = vcmp.eq.s32.totalorder %v460, 4
    %v473 = vtanh.pop %v455
    %vm474 = vcmp.eq.s32.totalorder %v460, 5
    %v475 = vmax.f32 %v455, 0.0
    %v476 = vsel %vm474, %v475, 0.0
    %v477 = vsel %vm472, %v473, %v476
    %v478 = vsel %vm461, %v471, %v477
    %479 = vst [vmem:[%s5] sm:$0xff] %v478
    %480 = vst [vmem:[%s5 + $0x8] sm:$0xff] %v457
    // Predicated region
    $region34: #{_muzero_forward_impl.1} parent=1 // pred_check
      _
    $region35: #{_muzero_forward_impl.1} parent=1 // pred_check_branch
      %482 = sbr.rel (0) target = $region37
    $region36: #{_muzero_forward_impl.1} parent=1 // pred_region
      _
    $region37: #{_muzero_forward_impl.1} parent=1 // pred_fallthru
      _
    // Predicated region
    $region38: #{_muzero_forward_impl.1} parent=1 // pred_check
      _
    $region39: #{_muzero_forward_impl.1} parent=1 // pred_check_branch
      %484 = sbr.rel (0) target = $region41
    $region40: #{_muzero_forward_impl.1} parent=1 // pred_region
      _
    $region41: #{_muzero_forward_impl.1} parent=1 // pred_fallthru
      _
    %485 = vsyncpa [#allocation3], 1
    %486 = vsyncpa [#allocation5], 1

</llo_original>
